<compile_context>
chip_gen: v6e
topology: v6e:2x2x1
jax: 0.10.0
libtpu: 0.0.40
codegen_flags: <defaults>
</compile_context>

<pallas_src>
import functools

import jax
import jax.numpy as jnp
from jax.experimental import pallas as pl
from jax.experimental.pallas import tpu as pltpu


def _round_up(x: int, m: int) -> int:
    return ((x + m - 1) // m) * m


# ---------------------------------------------------------------------------
# Kernel 1: A fully resident in VMEM.  Grid = (num_props, row-blocks).
# ---------------------------------------------------------------------------
def _chain_kernel_resident(x_ref, a_ref, o_ref, h_buf, *, tm, apply_act):
    """h_buf is a (2, N, F) bf16 ping-pong buffer holding H across the chain."""
    p = pl.program_id(0)          # propagation step
    i = pl.program_id(1)          # output row block

    # Load the input features into the ping buffer once, before anything reads it.
    @pl.when((p == 0) & (i == 0))
    def _():
        h_buf[0] = x_ref[...]

    src = p % 2                   # buffer holding H from the previous propagation
    dst = 1 - src                 # buffer receiving act(A @ H)

    irow = pl.multiple_of(i * tm, 128)
    # Full-contraction matmul: (tm, N) x (N, F) -> f32 on the MXU.
    y = jnp.dot(a_ref[pl.ds(irow, tm), :], h_buf[src],
                preferred_element_type=jnp.float32)
    if apply_act:
        y = jnp.maximum(y, 0.0)

    # Feed forward to the next propagation (stays in VMEM).
    h_buf[dst, pl.ds(irow, tm), :] = y.astype(h_buf.dtype)
    # Write the output block; the last propagation's write wins in HBM.
    o_ref[...] = y.astype(o_ref.dtype)


# ---------------------------------------------------------------------------
# Kernel 2 (fallback): A streamed in (tm, tk) tiles.
# Grid = (num_props, row-blocks, contraction-blocks); k innermost (reduction).
# ---------------------------------------------------------------------------
def _chain_kernel_stream(x_ref, a_ref, o_ref, h_buf, acc_ref, *, tm, tk, apply_act):
    p = pl.program_id(0)
    i = pl.program_id(1)
    k = pl.program_id(2)
    nk = pl.num_programs(2)

    @pl.when((p == 0) & (i == 0) & (k == 0))
    def _():
        h_buf[0] = x_ref[...]

    src = p % 2
    dst = 1 - src

    @pl.when(k == 0)
    def _():
        acc_ref[...] = jnp.zeros_like(acc_ref)

    krow = pl.multiple_of(k * tk, 128)
    h_tile = h_buf[src, pl.ds(krow, tk), :]              # (tk, F) bf16, VMEM resident
    acc_ref[...] += jnp.dot(                              # bf16 x bf16 -> f32 on MXU
        a_ref[...], h_tile, preferred_element_type=jnp.float32
    )

    @pl.when(k == nk - 1)
    def _():
        y = acc_ref[...]
        if apply_act:
            y = jnp.maximum(y, 0.0)
        irow = pl.multiple_of(i * tm, 128)
        h_buf[dst, pl.ds(irow, tm), :] = y.astype(h_buf.dtype)
        o_ref[...] = y.astype(o_ref.dtype)


def propagation_chain(a_norm, x, *, num_props, apply_act=True,
                      compute_dtype=jnp.bfloat16):
    """Fused chain h_{t+1} = act(A_norm @ h_t), t = 0..num_props-1, one pallas_call."""
    if num_props == 0:
        return x

    N, F = x.shape
    out_dtype = x.dtype

    # Pad to TPU-friendly shapes (zero rows/cols are inert under this propagation).
    F_pad = _round_up(F, 128)
    N_pad = _round_up(N, 128)
    tile = 128
    for t in (512, 384, 256, 128):       # largest N-axis tile that avoids extra padding
        if N_pad % t == 0:
            tile = t
            break
    tm = tk = tile

    a_p = jnp.pad(a_norm, ((0, N_pad - N), (0, N_pad - N))).astype(compute_dtype)
    x_p = jnp.pad(x, ((0, N_pad - N), (0, F_pad - F))).astype(compute_dtype)

    cbytes = jnp.dtype(compute_dtype).itemsize
    obytes = jnp.dtype(out_dtype).itemsize

    # VMEM footprint if A is held fully resident (assume inputs double-buffered).
    resident_bytes = (
        2 * N_pad * N_pad * cbytes      # A resident
        + 2 * N_pad * F_pad * cbytes    # x resident
        + 2 * N_pad * F_pad * cbytes    # H ping-pong buffers
        + 2 * tm * F_pad * obytes       # double-buffered output tiles
    )
    RESIDENT_BUDGET = 40 << 20          # conservative: fits v5e/v6e/v7x scoped VMEM

    if resident_bytes <= RESIDENT_BUDGET:
        kernel = functools.partial(_chain_kernel_resident, tm=tm, apply_act=apply_act)
        grid = (num_props, N_pad // tm)
        in_specs = [
            pl.BlockSpec((N_pad, F_pad), lambda p, i: (0, 0)),   # x: resident, DMA'd once
            pl.BlockSpec((N_pad, N_pad), lambda p, i: (0, 0)),   # A: resident, DMA'd once
        ]
        out_specs = pl.BlockSpec((tm, F_pad), lambda p, i: (i, 0))
        scratch = [pltpu.VMEM((2, N_pad, F_pad), compute_dtype)]
        semantics = ("arbitrary", "arbitrary")
        vmem_bytes = resident_bytes
    else:
        kernel = functools.partial(_chain_kernel_stream, tm=tm, tk=tk,
                                   apply_act=apply_act)
        grid = (num_props, N_pad // tm, N_pad // tk)
        in_specs = [
            pl.BlockSpec((N_pad, F_pad), lambda p, i, k: (0, 0)),  # x resident
            pl.BlockSpec((tm, tk), lambda p, i, k: (i, k)),        # A streamed tiles
        ]
        out_specs = pl.BlockSpec((tm, F_pad), lambda p, i, k: (i, 0))
        scratch = [
            pltpu.VMEM((2, N_pad, F_pad), compute_dtype),  # H ping-pong
            pltpu.VMEM((tm, F_pad), jnp.float32),          # f32 accumulator
        ]
        semantics = ("arbitrary", "arbitrary", "arbitrary")
        vmem_bytes = (
            2 * N_pad * F_pad * cbytes
            + 2 * N_pad * F_pad * cbytes
            + tm * F_pad * 4
            + 2 * tm * tk * cbytes
            + 2 * tm * F_pad * obytes
        )
        # TODO(synk): for graphs whose resident-H footprint exceeds VMEM (very large N
        # or very wide F), stream H through HBM / tile the feature axis.

    out_p = pl.pallas_call(
        kernel,
        out_shape=jax.ShapeDtypeStruct((N_pad, F_pad), out_dtype),
        grid_spec=pltpu.PrefetchScalarGridSpec(
            num_scalar_prefetch=0,
            grid=grid,
            in_specs=in_specs,
            out_specs=out_specs,
            scratch_shapes=scratch,
        ),
        compiler_params=pltpu.CompilerParams(
            # All axes "arbitrary": propagation steps are sequentially dependent
            # through the shared VMEM H buffers, so no axis may be core-sharded.
            dimension_semantics=semantics,
            vmem_limit_bytes=int(min(max(vmem_bytes + (8 << 20), 32 << 20), 64 << 20)),
        ),
    )(x_p, a_p)

    return out_p[:N, :F]


def build_normalized_adjacency(edge_index, num_nodes, dtype=jnp.float32):
    """Dense GCN-style adjacency: D^{-1/2} (A + I) D^{-1/2}. Plain-JAX glue.

    Self-loops are set exactly once even if edge_index already contains them.
    """
    src, dst = edge_index[0], edge_index[1]
    a = jnp.zeros((num_nodes, num_nodes), dtype=dtype)
    a = a.at[src, dst].set(1.0)
    a = a.at[dst, src].set(1.0)                 # symmetrize (undirected)
    diag = jnp.arange(num_nodes)
    a = a.at[diag, diag].set(1.0)               # self-loops (no double counting)
    deg = jnp.sum(a, axis=1)
    d_inv_sqrt = jnp.where(deg > 0, jax.lax.rsqrt(deg), 0.0)
    return a * d_inv_sqrt[:, None] * d_inv_sqrt[None, :]


class PropagationChainPallas:
    """JAX/Pallas equivalent of PropagationChain, instantiated with GCN-normalized
    dense propagation (h <- A_norm @ h) and ReLU activations; the whole chain runs
    fused inside a single Pallas kernel."""

    def __init__(self, num_props: int, use_activations: bool = True):
        self.num_props = num_props
        self.use_activations = use_activations
        # TODO(synk): cache a_norm across forward calls (it depends only on
        # edge_index), instead of rebuilding the dense adjacency every call.

    def __call__(self, x, edge_index):
        a_norm = build_normalized_adjacency(edge_index, x.shape[0], dtype=jnp.float32)
        return propagation_chain(
            a_norm, x, num_props=self.num_props, apply_act=self.use_activations
        )


if __name__ == "__main__":
    key = jax.random.PRNGKey(0)
    k_x, k_e = jax.random.split(key)

    num_nodes = 256       # N
    num_feats = 128       # F
    num_edges = 1024      # E
    num_props = 3

    x = jax.random.normal(k_x, (num_nodes, num_feats), dtype=jnp.float32)
    edge_index = jax.random.randint(
        k_e, (2, num_edges), minval=0, maxval=num_nodes, dtype=jnp.int32
    )

    chain = PropagationChainPallas(num_props=num_props, use_activations=True)
    out = jax.block_until_ready(chain(x, edge_index))

    # Plain-JAX f32 reference with identical semantics.
    a_norm = build_normalized_adjacency(edge_index, num_nodes)
    h_ref = x
    for _ in range(num_props):
        h_ref = jnp.maximum(a_norm @ h_ref, 0.0)

    assert out.shape == (num_nodes, num_feats)
    max_err = float(jnp.max(jnp.abs(out - h_ref)))
    assert jnp.allclose(out, h_ref, atol=2e-2, rtol=2e-2), f"max abs err {max_err}"

    print("KERNEL_OK")
</pallas_src>

<mosaic_0001>
module attributes {stable_mosaic.version = 11 : i64} {
  func.func @_chain_kernel_resident(%arg0: i32, %arg1: i32, %arg2: memref<256x128xbf16, #tpu.memory_space<vmem>>, %arg3: memref<256x256xbf16, #tpu.memory_space<vmem>>, %arg4: memref<256x128xf32, #tpu.memory_space<vmem>>, %arg5: memref<2x256x128xbf16, #tpu.memory_space<vmem>>) attributes {dimension_semantics = [#tpu.dimension_semantics<arbitrary>, #tpu.dimension_semantics<arbitrary>], iteration_bounds = array<i64: 3, 1>, scalar_prefetch = 0 : i64, scratch_operands = 1 : i64, tpu.core_type = #tpu.core_type<tc>, window_params = [{pipeline_mode = #tpu.pipeline_mode<synchronous>, transform_indices = @transform_0, window_bounds = array<i64: 256, 128>}, {pipeline_mode = #tpu.pipeline_mode<synchronous>, transform_indices = @transform_1, window_bounds = array<i64: 256, 256>}, {transform_indices = @transform_2, window_bounds = array<i64: 256, 128>}]} {
    %c0_i32 = arith.constant 0 : i32
    %0 = arith.cmpi eq, %arg0, %c0_i32 : i32
    %c0_i32_0 = arith.constant 0 : i32
    %1 = arith.cmpi eq, %arg1, %c0_i32_0 : i32
    %2 = arith.andi %0, %1 : i1
    %3 = arith.extui %2 : i1 to i32
    %c0_i32_1 = arith.constant 0 : i32
    %4 = arith.cmpi ne, %3, %c0_i32_1 : i32
    scf.if %4 {
      %c0_13 = arith.constant 0 : index
      %c0_14 = arith.constant 0 : index
      %33 = vector.load %arg2[%c0_13, %c0_14] : memref<256x128xbf16, #tpu.memory_space<vmem>>, vector<256x128xbf16>
      %c0_15 = arith.constant 0 : index
      %c0_16 = arith.constant 0 : index
      %c0_17 = arith.constant 0 : index
      %34 = vector.load %arg5[%c0_15, %c0_16, %c0_17] : memref<2x256x128xbf16, #tpu.memory_space<vmem>>, vector<1x256x128xbf16>
      %35 = vector.shape_cast %34 : vector<1x256x128xbf16> to vector<256x128xbf16>
      %36 = vector.shape_cast %33 : vector<256x128xbf16> to vector<1x256x128xbf16>
      tpu.vector_store %arg5[%c0_15, %c0_16, %c0_17], %36 {strides = array<i32>} : memref<2x256x128xbf16, #tpu.memory_space<vmem>>, vector<1x256x128xbf16>,
    } else {
    }
    %c2_i32 = arith.constant 2 : i32
    %c0_i32_2 = arith.constant 0 : i32
    %5 = arith.cmpi eq, %c2_i32, %c0_i32_2 : i32
    %c1_i32 = arith.constant 1 : i32
    %6 = arith.select %5, %c1_i32, %c2_i32 : i32
    %7 = arith.remsi %arg0, %6 : i32
    %c0_i32_3 = arith.constant 0 : i32
    %8 = arith.cmpi ne, %7, %c0_i32_3 : i32
    %c0_i32_4 = arith.constant 0 : i32
    %9 = arith.cmpi slt, %7, %c0_i32_4 : i32
    %c0_i32_5 = arith.constant 0 : i32
    %10 = arith.cmpi slt, %6, %c0_i32_5 : i32
    %11 = arith.xori %9, %10 : i1
    %12 = arith.andi %11, %8 : i1
    %13 = arith.addi %7, %6 : i32
    %14 = arith.select %12, %13, %7 : i32
    %c1_i32_6 = arith.constant 1 : i32
    %15 = arith.subi %c1_i32_6, %14 : i32
    %c256_i32 = arith.constant 256 : i32
    %16 = arith.muli %arg1, %c256_i32 : i32
    %17 = tpu.assume_multiple %16, 128 : i32
    %18 = arith.index_cast %17 : i32 to index
    %c0 = arith.constant 0 : index
    %19 = vector.load %arg3[%18, %c0] : memref<256x256xbf16, #tpu.memory_space<vmem>>, vector<256x256xbf16>
    %20 = arith.index_cast %14 : i32 to index
    %c0_7 = arith.constant 0 : index
    %c0_8 = arith.constant 0 : index
    %21 = vector.load %arg5[%20, %c0_7, %c0_8] : memref<2x256x128xbf16, #tpu.memory_space<vmem>>, vector<1x256x128xbf16>
    %22 = vector.shape_cast %21 : vector<1x256x128xbf16> to vector<256x128xbf16>
    %cst = arith.constant dense<0.000000e+00> : vector<256x128xf32>
    %23 = tpu.matmul %19, %22, %cst {dimension_numbers = #tpu.dot_dimension_numbers<[1], [0], [0], [1], [0, 0, 1, 1], [], []>} : vector<256x256xbf16>, vector<256x128xbf16>, vector<256x128xf32> -> vector<256x128xf32>
    %cst_9 = arith.constant 0.000000e+00 : f32
    %24 = vector.broadcast %cst_9 : f32 to vector<256x128xf32>
    %25 = arith.maximumf %23, %24 : vector<256x128xf32>
    %26 = arith.truncf %25 : vector<256x128xf32> to vector<256x128xbf16>
    %27 = arith.index_cast %15 : i32 to index
    %28 = arith.index_cast %17 : i32 to index
    %c0_10 = arith.constant 0 : index
    %29 = vector.load %arg5[%27, %28, %c0_10] : memref<2x256x128xbf16, #tpu.memory_space<vmem>>, vector<1x256x128xbf16>
    %30 = vector.shape_cast %29 : vector<1x256x128xbf16> to vector<256x128xbf16>
    %31 = vector.shape_cast %26 : vector<256x128xbf16> to vector<1x256x128xbf16>
    tpu.vector_store %arg5[%27, %28, %c0_10], %31 {strides = array<i32>} : memref<2x256x128xbf16, #tpu.memory_space<vmem>>, vector<1x256x128xbf16>,
    %c0_11 = arith.constant 0 : index
    %c0_12 = arith.constant 0 : index
    %32 = vector.load %arg4[%c0_11, %c0_12] : memref<256x128xf32, #tpu.memory_space<vmem>>, vector<256x128xf32>
    tpu.vector_store %arg4[%c0_11, %c0_12], %25 {strides = array<i32>} : memref<256x128xf32, #tpu.memory_space<vmem>>, vector<256x128xf32>,
    return
  }
  func.func @transform_0(%arg0: i32, %arg1: i32) -> (i32, i32) {
    %c0_i32 = arith.constant 0 : i32
    %c0_i32_0 = arith.constant 0 : i32
    %c0_i32_1 = arith.constant 0 : i32
    return %c0_i32, %c0_i32_0 : i32, i32
  }
  func.func @transform_1(%arg0: i32, %arg1: i32) -> (i32, i32) {
    %c0_i32 = arith.constant 0 : i32
    %c0_i32_0 = arith.constant 0 : i32
    %c0_i32_1 = arith.constant 0 : i32
    return %c0_i32, %c0_i32_0 : i32, i32
  }
  func.func @transform_2(%arg0: i32, %arg1: i32) -> (i32, i32) {
    %c0_i32 = arith.constant 0 : i32
    %c0_i32_0 = arith.constant 0 : i32
    return %arg1, %c0_i32 : i32, i32
  }
}

</mosaic_0001>

<llo_original>
// kernel: tpu_custom_call.1
$region0: #{tpu_custom_call.1}
  #allocation0 [shape = 'u32[]', space=smem, size = 0x4, offset = 0x4, fixed_abs, tag = 'smem constant byte address 0x4 - core index']
  #allocation1 [shape = 'u32[144,128]{1,0:T(1,128)}', space=vmem, size = 0x12000, scoped, tag = 'internal scratch']
  #allocation2 [shape = 'bf16[2,256,128]{2,1,0:T(8,128)(2,1)}', space=vmem, size = 0x20000, scoped, tag = 'scratch operand']
  %s0 = inlined_call_operand.hbm [shape: bf16[256,128], index: 0, kind: input, shape index: {}]
  %s1 = inlined_call_operand.hbm [shape: bf16[256,256], index: 1, kind: input, shape index: {}]
  %s2 = inlined_call_operand.hbm [shape: f32[256,128], index: 2, kind: output, shape index: {}]
  %s3 = sld [smem:[#allocation0]]
  $region53: #{tpu_custom_call.1} parent=0
    _
  %s5 = ssub.s32 1, %s3
  %s6 = scalar_select 0, %s5, %s3
  $region1: #{tpu_custom_call.1} parent=0
    #allocation3 [shape = 'u8[65536]{0}', space=vmem, size = 0x10000, scoped, tag = 'input window, operand 0, single buffered']
    #allocation4 [shape = 's32[2]{0}', space=sflag, size = 0x8, scoped, tag = 'scoped memory for tpu_custom_call.1']
    #allocation5 [shape = 's32[2]{0}', space=sflag, size = 0x8, scoped, tag = 'scoped memory for tpu_custom_call.1']
    #allocation6 [shape = 'u8[131072]{0}', space=vmem, size = 0x20000, scoped, tag = 'input window, operand 1, single buffered']
    #allocation7 [shape = 's32[1]{0}', space=sflag, size = 0x4, scoped, tag = 'scoped memory for tpu_custom_call.1']
    #allocation8 [shape = 'u8[131072]{0}', space=vmem, size = 0x20000, scoped, tag = 'output window, operand 0, single buffered']
    %7 = vsyncpa [#allocation4], 0
    %8 = vsyncpa [#allocation7], 0
    %9 = vsyncpa [#allocation5], 0
    loop: start=0, step=1, limit=5
    $region2: #{tpu_custom_call.1} parent=1 // loop_pre_header
      _
    $region3: #{tpu_custom_call.1} parent=1 // loop_header
      %s11 = sphi 0, %s15
      %p12 = scmp.ge.s32.totalorder %s11, 5
      %s18 = sphi 0, %s30
      %s19 = sphi 0, %s26
      %s20 = sphi 0, %s18
      %s21 = sphi 0, %s19
      %s22 = sphi 0, %s20
      %s23 = sphi 0, %s21
      %s31 = sphi 0, %s31
      %s33 = sphi 0, %s31
      %s34 = sphi 0, %s33
      %s48 = sphi 0, %s34
      %s52 = sphi 0, %s52
      %s54 = sphi 0, %s52
      %s55 = sphi 0, %s54
      %s69 = sphi 0, %s55
      %s75 = sphi 0, %s77
      %s78 = sphi 0, %s75
      %s79 = sphi 0, %s78
      %s95 = sphi 0, %s79
    $region4: #{tpu_custom_call.1} parent=1 // loop_header_branch
      %14 = sbr.rel (%p12) target = $region8
    $region5: #{tpu_custom_call.1} parent=1 // loop_body
      %s16 = ssub.s32 %s11, 1
      %s17 = ssub.s32 %s11, 2
      %s24 = sadd.s32 1, %s19
      %p25 = scmp.ge.s32.totalorder %s24, 1
      %s26 = scalar_select %p25, 0, %s24
      %s27 = sadd.s32 1, %s18
      %s28 = scalar_select %p25, %s27, %s18
      %p29 = scmp.ge.s32.totalorder %s28, 3
      %s30 = scalar_select %p29, 0, %s28
      %s32 = sadd.s32 %s31, 1
      %p35 = scmp.eq.s32.totalorder %s11, 2
      %p36 = scmp.ne.s32.totalorder %s31, %s33
      %p37 = scmp.eq.s32.totalorder %s11, 0
      %p38 = por %p36, %p37
      %p39 = scmp.ne.s32.totalorder %s31, %s33
      %p40 = scmp.eq.s32.totalorder %s16, 2
      %p41 = por %p39, %p40
      %p42 = scmp.ne.s32.totalorder %s33, %s34
      %p43 = scmp.eq.s32.totalorder %s16, 0
      %p44 = por %p42, %p43
      %p45 = scmp.ne.s32.totalorder %s33, %s34
      %p46 = scmp.eq.s32.totalorder %s17, 2
      %p47 = por %p45, %p46
      %p49 = scmp.ne.s32.totalorder %s34, %s48
      %p50 = scmp.eq.s32.totalorder %s17, 0
      %p51 = por %p49, %p50
      %s53 = sadd.s32 %s52, 1
      %p56 = scmp.eq.s32.totalorder %s11, 2
      %p57 = scmp.ne.s32.totalorder %s52, %s54
      %p58 = scmp.eq.s32.totalorder %s11, 0
      %p59 = por %p57, %p58
      %p60 = scmp.ne.s32.totalorder %s52, %s54
      %p61 = scmp.eq.s32.totalorder %s16, 2
      %p62 = por %p60, %p61
      %p63 = scmp.ne.s32.totalorder %s54, %s55
      %p64 = scmp.eq.s32.totalorder %s16, 0
      %p65 = por %p63, %p64
      %p66 = scmp.ne.s32.totalorder %s54, %s55
      %p67 = scmp.eq.s32.totalorder %s17, 2
      %p68 = por %p66, %p67
      %p70 = scmp.ne.s32.totalorder %s55, %s69
      %p71 = scmp.eq.s32.totalorder %s17, 0
      %p72 = por %p70, %p71
      %s73 = ssub.s32 %s19, %s26
      %p74 = scmp.eq.s32.totalorder %s73, 0
      %s76 = sadd.s32 %s75, 1
      %s77 = scalar_select %p74, %s75, %s76
      %p80 = pneg %p74
      %p81 = scmp.eq.s32.totalorder %s11, 2
      %p82 = por %p80, %p81
      %p83 = scmp.ne.s32.totalorder %s75, %s78
      %p84 = scmp.eq.s32.totalorder %s11, 0
      %p85 = por %p83, %p84
      %p86 = scmp.ne.s32.totalorder %s75, %s78
      %p87 = scmp.eq.s32.totalorder %s16, 2
      %p88 = por %p86, %p87
      %p89 = scmp.ne.s32.totalorder %s78, %s79
      %p90 = scmp.eq.s32.totalorder %s16, 0
      %p91 = por %p89, %p90
      %p92 = scmp.ne.s32.totalorder %s78, %s79
      %p93 = scmp.eq.s32.totalorder %s17, 2
      %p94 = por %p92, %p93
      %p96 = scmp.ne.s32.totalorder %s79, %s95
      %p97 = scmp.eq.s32.totalorder %s17, 0
      %p98 = por %p96, %p97
      %p99 = scmp.le.s32.totalorder 1, %s11
      %p100 = scmp.lt.s32.totalorder %s11, 4
      %p101 = pnand %p99, %p100
      %p102 = pneg %p101
      // Predicated region
      $region9: #{tpu_custom_call.1} parent=5 // pred_check
        _
      $region10: #{tpu_custom_call.1} parent=5 // pred_check_branch
        %104 = sbr.rel (%p101) target = $region12
      $region11: #{tpu_custom_call.1} parent=5 // pred_region
        %s105 = ssub.s32 %s11, 1
        // Predicated region
        $region13: #{tpu_custom_call.1} parent=11 // pred_check
          %p106 = pneg %p44
        $region14: #{tpu_custom_call.1} parent=11 // pred_check_branch
          %108 = sbr.rel (%p106) target = $region16
        $region15: #{tpu_custom_call.1} parent=11 // pred_region
          %s110 = ssub.s32 2048, 2048
          %111 = vsyncadd [#allocation4], %s110
          %s112 = sshll.u32 [#allocation3], 4
          %s113 = int_to_ptr.vmem [resolvable:$true] %s112
          %118 = dma.hbm_to_vmem [thread:$0]  %s0, 2048, %s113, [#allocation4], 64, 64, 4
        $region16: #{tpu_custom_call.1} parent=11 // pred_fallthru
          _
        // Predicated region
        $region17: #{tpu_custom_call.1} parent=11 // pred_check
          %p119 = pneg %p65
        $region18: #{tpu_custom_call.1} parent=11 // pred_check_branch
          %121 = sbr.rel (%p119) target = $region20
        $region19: #{tpu_custom_call.1} parent=11 // pred_region
          %s123 = ssub.s32 4096, 4096
          %124 = vsyncadd [#allocation7], %s123
          %s125 = sshll.u32 [#allocation6], 4
          %s126 = int_to_ptr.vmem [resolvable:$true] %s125
          %131 = dma.hbm_to_vmem [thread:$0]  %s1, 4096, %s126, [#allocation7], 128, 128, 8
        $region20: #{tpu_custom_call.1} parent=11 // pred_fallthru
          _
      $region12: #{tpu_custom_call.1} parent=5 // pred_fallthru
        _
      %p132 = scmp.lt.s32.totalorder %s11, 3
      // Predicated region
      $region21: #{tpu_custom_call.1} parent=5 // pred_check
        %p133 = pneg %p132
      $region22: #{tpu_custom_call.1} parent=5 // pred_check_branch
        %135 = sbr.rel (%p133) target = $region24
      $region23: #{tpu_custom_call.1} parent=5 // pred_region
        _
      $region24: #{tpu_custom_call.1} parent=5 // pred_fallthru
        _
      %p136 = scmp.le.s32.totalorder 1, %s11
      %p137 = scmp.lt.s32.totalorder %s11, 4
      %p138 = pnand %p136, %p137
      %p139 = pneg %p138
      // Predicated region
      $region25: #{tpu_custom_call.1} parent=5 // pred_check
        _
      $region26: #{tpu_custom_call.1} parent=5 // pred_check_branch
        %141 = sbr.rel (%p138) target = $region28
      $region27: #{tpu_custom_call.1} parent=5 // pred_region
        %s142 = ssub.s32 %s11, 1
        // Predicated region
        $region29: #{tpu_custom_call.1} parent=27 // pred_check
          %p143 = pneg %p44
        $region30: #{tpu_custom_call.1} parent=27 // pred_check_branch
          %145 = sbr.rel (%p143) target = $region32
        $region31: #{tpu_custom_call.1} parent=27 // pred_region
          %146 = dma.done [#allocation4], 2048
        $region32: #{tpu_custom_call.1} parent=27 // pred_fallthru
          _
        // Predicated region
        $region33: #{tpu_custom_call.1} parent=27 // pred_check
          %p147 = pneg %p65
        $region34: #{tpu_custom_call.1} parent=27 // pred_check_branch
          %149 = sbr.rel (%p147) target = $region36
        $region35: #{tpu_custom_call.1} parent=27 // pred_region
          %150 = dma.done [#allocation7], 4096
        $region36: #{tpu_custom_call.1} parent=27 // pred_fallthru
          _
        %p151 = pneg %p44
        %p152 = pneg %p41
        %p153 = pneg %p65
        %p154 = pneg %p62
        %p155 = pneg %p91
        %p156 = pneg %p88
        %s157 = smul.u32 32, %s21
        %p159 = scmp.eq.s32.totalorder %s20, 0
        %p160 = scmp.eq.s32.totalorder %s21, 0
        %p161 = pnand %p159, %p160
        %p162 = pneg %p161
        // Predicated region
        $region37: #{tpu_custom_call.1} parent=27 // pred_check
          _
        $region38: #{tpu_custom_call.1} parent=27 // pred_check_branch
          %164 = sbr.rel (%p161) target = $region40
        $region39: #{tpu_custom_call.1} parent=27 // pred_region
          %v165 = vld [vmem:[#allocation3] sm:$0xf]
          %v166 = vld [vmem:[#allocation3 + $0x4] sm:$0xf]
          %v167 = vld [vmem:[#allocation3 + $0x8] sm:$0xf]
          %v168 = vld [vmem:[#allocation3 + $0xc] sm:$0xf]
          %v169 = vld [vmem:[#allocation3 + $0x10] sm:$0xf]
          %v170 = vld [vmem:[#allocation3 + $0x14] sm:$0xf]
          %v171 = vld [vmem:[#allocation3 + $0x18] sm:$0xf]
          %v172 = vld [vmem:[#allocation3 + $0x1c] sm:$0xf]
          %v173 = vld [vmem:[#allocation3 + $0x20] sm:$0xf]
          %v174 = vld [vmem:[#allocation3 + $0x24] sm:$0xf]
          %v175 = vld [vmem:[#allocation3 + $0x28] sm:$0xf]
          %v176 = vld [vmem:[#allocation3 + $0x2c] sm:$0xf]
          %v177 = vld [vmem:[#allocation3 + $0x30] sm:$0xf]
          %v178 = vld [vmem:[#allocation3 + $0x34] sm:$0xf]
          %v179 = vld [vmem:[#allocation3 + $0x38] sm:$0xf]
          %v180 = vld [vmem:[#allocation3 + $0x3c] sm:$0xf]
          %v181 = vld [vmem:[#allocation3 + $0x40] sm:$0xf]
          %v182 = vld [vmem:[#allocation3 + $0x44] sm:$0xf]
          %v183 = vld [vmem:[#allocation3 + $0x48] sm:$0xf]
          %v184 = vld [vmem:[#allocation3 + $0x4c] sm:$0xf]
          %v185 = vld [vmem:[#allocation3 + $0x50] sm:$0xf]
          %v186 = vld [vmem:[#allocation3 + $0x54] sm:$0xf]
          %v187 = vld [vmem:[#allocation3 + $0x58] sm:$0xf]
          %v188 = vld [vmem:[#allocation3 + $0x5c] sm:$0xf]
          %v189 = vld [vmem:[#allocation3 + $0x60] sm:$0xf]
          %v190 = vld [vmem:[#allocation3 + $0x64] sm:$0xf]
          %v191 = vld [vmem:[#allocation3 + $0x68] sm:$0xf]
          %v192 = vld [vmem:[#allocation3 + $0x6c] sm:$0xf]
          %v193 = vld [vmem:[#allocation3 + $0x70] sm:$0xf]
          %v194 = vld [vmem:[#allocation3 + $0x74] sm:$0xf]
          %v195 = vld [vmem:[#allocation3 + $0x78] sm:$0xf]
          %v196 = vld [vmem:[#allocation3 + $0x7c] sm:$0xf]
          %197 = vst [vmem:[#allocation2] sm:$0xf] %v165
          %198 = vst [vmem:[#allocation2 + $0x4] sm:$0xf] %v166
          %199 = vst [vmem:[#allocation2 + $0x8] sm:$0xf] %v167
          %200 = vst [vmem:[#allocation2 + $0xc] sm:$0xf] %v168
          %201 = vst [vmem:[#allocation2 + $0x10] sm:$0xf] %v169
          %202 = vst [vmem:[#allocation2 + $0x14] sm:$0xf] %v170
          %203 = vst [vmem:[#allocation2 + $0x18] sm:$0xf] %v171
          %204 = vst [vmem:[#allocation2 + $0x1c] sm:$0xf] %v172
          %205 = vst [vmem:[#allocation2 + $0x20] sm:$0xf] %v173
          %206 = vst [vmem:[#allocation2 + $0x24] sm:$0xf] %v174
          %207 = vst [vmem:[#allocation2 + $0x28] sm:$0xf] %v175
          %208 = vst [vmem:[#allocation2 + $0x2c] sm:$0xf] %v176
          %209 = vst [vmem:[#allocation2 + $0x30] sm:$0xf] %v177
          %210 = vst [vmem:[#allocation2 + $0x34] sm:$0xf] %v178
          %211 = vst [vmem:[#allocation2 + $0x38] sm:$0xf] %v179
          %212 = vst [vmem:[#allocation2 + $0x3c] sm:$0xf] %v180
          %213 = vst [vmem:[#allocation2 + $0x40] sm:$0xf] %v181
          %214 = vst [vmem:[#allocation2 + $0x44] sm:$0xf] %v182
          %215 = vst [vmem:[#allocation2 + $0x48] sm:$0xf] %v183
          %216 = vst [vmem:[#allocation2 + $0x4c] sm:$0xf] %v184
          %217 = vst [vmem:[#allocation2 + $0x50] sm:$0xf] %v185
          %218 = vst [vmem:[#allocation2 + $0x54] sm:$0xf] %v186
          %219 = vst [vmem:[#allocation2 + $0x58] sm:$0xf] %v187
          %220 = vst [vmem:[#allocation2 + $0x5c] sm:$0xf] %v188
          %221 = vst [vmem:[#allocation2 + $0x60] sm:$0xf] %v189
          %222 = vst [vmem:[#allocation2 + $0x64] sm:$0xf] %v190
          %223 = vst [vmem:[#allocation2 + $0x68] sm:$0xf] %v191
          %224 = vst [vmem:[#allocation2 + $0x6c] sm:$0xf] %v192
          %225 = vst [vmem:[#allocation2 + $0x70] sm:$0xf] %v193
          %226 = vst [vmem:[#allocation2 + $0x74] sm:$0xf] %v194
          %227 = vst [vmem:[#allocation2 + $0x78] sm:$0xf] %v195
          %228 = vst [vmem:[#allocation2 + $0x7c] sm:$0xf] %v196
        $region40: #{tpu_custom_call.1} parent=27 // pred_fallthru
          _
        %p229 = scmp.lt.s32.totalorder %s20, 0
        %s230 = ssub.s32 0, %s20
        %s231 = scalar_select %p229, %s230, %s20
        %s232 = sand.u32 %s231, 1
        %s233 = ssub.s32 0, %s232
        %s234 = scalar_select %p229, %s233, %s232
        %p235 = scmp.ne.s32.totalorder %s234, 0
        %p236 = scmp.lt.s32.totalorder %s234, 0
        %p237 = pnand %p236, %p235
        %p238 = pneg %p237
        %s239 = sadd.s32 %s234, 2
        %s240 = scalar_select %p238, %s239, %s234
        %s241 = ssub.s32 1, %s240
        %s242 = smul.u32 %s21, 256
        %s243 = sshra.s32 %s242, 3
        %s244 = sand.u32 %s242, 7
        %s245 = smul.u32 %s243, 2
        %s246 = smul.addr %s245, 4
        %s247 = scalar_lea.vmem [#allocation6], %s246
        %v248 = vld [vmem:[%s247] sm:$0xff]
        %v249 = vld [vmem:[%s247 + $0x8] sm:$0xff]
        %v250 = vld [vmem:[%s247 + $0x10] sm:$0xff]
        %v251 = vld [vmem:[%s247 + $0x18] sm:$0xff]
        %v252 = vld [vmem:[%s247 + $0x20] sm:$0xff]
        %v253 = vld [vmem:[%s247 + $0x28] sm:$0xff]
        %v254 = vld [vmem:[%s247 + $0x30] sm:$0xff]
        %v255 = vld [vmem:[%s247 + $0x38] sm:$0xff]
        %v256 = vld [vmem:[%s247 + $0x40] sm:$0xff]
        %v257 = vld [vmem:[%s247 + $0x48] sm:$0xff]
        %v258 = vld [vmem:[%s247 + $0x50] sm:$0xff]
        %v259 = vld [vmem:[%s247 + $0x58] sm:$0xff]
        %v260 = vld [vmem:[%s247 + $0x60] sm:$0xff]
        %v261 = vld [vmem:[%s247 + $0x68] sm:$0xff]
        %v262 = vld [vmem:[%s247 + $0x70] sm:$0xff]
        %v263 = vld [vmem:[%s247 + $0x78] sm:$0xff]
        %v264 = vld [vmem:[%s247 + $0x80] sm:$0xff]
        %v265 = vld [vmem:[%s247 + $0x88] sm:$0xff]
        %v266 = vld [vmem:[%s247 + $0x90] sm:$0xff]
        %v267 = vld [vmem:[%s247 + $0x98] sm:$0xff]
        %v268 = vld [vmem:[%s247 + $0xa0] sm:$0xff]
        %v269 = vld [vmem:[%s247 + $0xa8] sm:$0xff]
        %v270 = vld [vmem:[%s247 + $0xb0] sm:$0xff]
        %v271 = vld [vmem:[%s247 + $0xb8] sm:$0xff]
        %v272 = vld [vmem:[%s247 + $0xc0] sm:$0xff]
        %v273 = vld [vmem:[%s247 + $0xc8] sm:$0xff]
        %v274 = vld [vmem:[%s247 + $0xd0] sm:$0xff]
        %v275 = vld [vmem:[%s247 + $0xd8] sm:$0xff]
        %v276 = vld [vmem:[%s247 + $0xe0] sm:$0xff]
        %v277 = vld [vmem:[%s247 + $0xe8] sm:$0xff]
        %v278 = vld [vmem:[%s247 + $0xf0] sm:$0xff]
        %v279 = vld [vmem:[%s247 + $0xf8] sm:$0xff]
        %s280 = smul.u32 %s240, 32
        %s281 = smul.addr %s280, 4
        %s282 = scalar_lea.vmem [#allocation2], %s281
        %v283 = vld [vmem:[%s282] sm:$0xf]
        %v284 = vld [vmem:[%s282 + $0x4] sm:$0xf]
        %v285 = vld [vmem:[%s282 + $0x8] sm:$0xf]
        %v286 = vld [vmem:[%s282 + $0xc] sm:$0xf]
        %v287 = vld [vmem:[%s282 + $0x10] sm:$0xf]
        %v288 = vld [vmem:[%s282 + $0x14] sm:$0xf]
        %v289 = vld [vmem:[%s282 + $0x18] sm:$0xf]
        %v290 = vld [vmem:[%s282 + $0x1c] sm:$0xf]
        %v291 = vld [vmem:[%s282 + $0x20] sm:$0xf]
        %v292 = vld [vmem:[%s282 + $0x24] sm:$0xf]
        %v293 = vld [vmem:[%s282 + $0x28] sm:$0xf]
        %v294 = vld [vmem:[%s282 + $0x2c] sm:$0xf]
        %v295 = vld [vmem:[%s282 + $0x30] sm:$0xf]
        %v296 = vld [vmem:[%s282 + $0x34] sm:$0xf]
        %v297 = vld [vmem:[%s282 + $0x38] sm:$0xf]
        %v298 = vld [vmem:[%s282 + $0x3c] sm:$0xf]
        %v299 = vld [vmem:[%s282 + $0x40] sm:$0xf]
        %v300 = vld [vmem:[%s282 + $0x44] sm:$0xf]
        %v301 = vld [vmem:[%s282 + $0x48] sm:$0xf]
        %v302 = vld [vmem:[%s282 + $0x4c] sm:$0xf]
        %v303 = vld [vmem:[%s282 + $0x50] sm:$0xf]
        %v304 = vld [vmem:[%s282 + $0x54] sm:$0xf]
        %v305 = vld [vmem:[%s282 + $0x58] sm:$0xf]
        %v306 = vld [vmem:[%s282 + $0x5c] sm:$0xf]
        %v307 = vld [vmem:[%s282 + $0x60] sm:$0xf]
        %v308 = vld [vmem:[%s282 + $0x64] sm:$0xf]
        %v309 = vld [vmem:[%s282 + $0x68] sm:$0xf]
        %v310 = vld [vmem:[%s282 + $0x6c] sm:$0xf]
        %v311 = vld [vmem:[%s282 + $0x70] sm:$0xf]
        %v312 = vld [vmem:[%s282 + $0x74] sm:$0xf]
        %v313 = vld [vmem:[%s282 + $0x78] sm:$0xf]
        %v314 = vld [vmem:[%s282 + $0x7c] sm:$0xf]
        %v347 = vunpack.c.l.b16 %v248
        %v348 = vunpack.c.h.b16 %v248
        %v349 = vunpack.c.l.b16 %v249
        %v350 = vunpack.c.h.b16 %v249
        %v351 = vunpack.c.l.b16 %v250
        %v352 = vunpack.c.h.b16 %v250
        %v353 = vunpack.c.l.b16 %v251
        %v354 = vunpack.c.h.b16 %v251
        %v355 = vunpack.c.l.b16 %v252
        %v356 = vunpack.c.h.b16 %v252
        %v357 = vunpack.c.l.b16 %v253
        %v358 = vunpack.c.h.b16 %v253
        %v359 = vunpack.c.l.b16 %v254
        %v360 = vunpack.c.h.b16 %v254
        %v361 = vunpack.c.l.b16 %v255
        %v362 = vunpack.c.h.b16 %v255
        %v363 = vunpack.c.l.b16 %v256
        %v364 = vunpack.c.h.b16 %v256
        %v365 = vunpack.c.l.b16 %v257
        %v366 = vunpack.c.h.b16 %v257
        %v367 = vunpack.c.l.b16 %v258
        %v368 = vunpack.c.h.b16 %v258
        %v369 = vunpack.c.l.b16 %v259
        %v370 = vunpack.c.h.b16 %v259
        %v371 = vunpack.c.l.b16 %v260
        %v372 = vunpack.c.h.b16 %v260
        %v373 = vunpack.c.l.b16 %v261
        %v374 = vunpack.c.h.b16 %v261
        %v375 = vunpack.c.l.b16 %v262
        %v376 = vunpack.c.h.b16 %v262
        %v377 = vunpack.c.l.b16 %v263
        %v378 = vunpack.c.h.b16 %v263
        %v379 = vunpack.c.l.b16 %v264
        %v380 = vunpack.c.h.b16 %v264
        %v381 = vunpack.c.l.b16 %v265
        %v382 = vunpack.c.h.b16 %v265
        %v383 = vunpack.c.l.b16 %v266
        %v384 = vunpack.c.h.b16 %v266
        %v385 = vunpack.c.l.b16 %v267
        %v386 = vunpack.c.h.b16 %v267
        %v387 = vunpack.c.l.b16 %v268
        %v388 = vunpack.c.h.b16 %v268
        %v389 = vunpack.c.l.b16 %v269
        %v390 = vunpack.c.h.b16 %v269
        %v391 = vunpack.c.l.b16 %v270
        %v392 = vunpack.c.h.b16 %v270
        %v393 = vunpack.c.l.b16 %v271
        %v394 = vunpack.c.h.b16 %v271
        %v395 = vunpack.c.l.b16 %v272
        %v396 = vunpack.c.h.b16 %v272
        %v397 = vunpack.c.l.b16 %v273
        %v398 = vunpack.c.h.b16 %v273
        %v399 = vunpack.c.l.b16 %v274
        %v400 = vunpack.c.h.b16 %v274
        %v401 = vunpack.c.l.b16 %v275
        %v402 = vunpack.c.h.b16 %v275
        %v403 = vunpack.c.l.b16 %v276
        %v404 = vunpack.c.h.b16 %v276
        %v405 = vunpack.c.l.b16 %v277
        %v406 = vunpack.c.h.b16 %v277
        %v407 = vunpack.c.l.b16 %v278
        %v408 = vunpack.c.h.b16 %v278
        %v409 = vunpack.c.l.b16 %v279
        %v410 = vunpack.c.h.b16 %v279
        %v411 = vpack.c.b16 %v349, %v347
        %v412 = vpack.c.b16 %v350, %v348
        %v413 = vpack.c.b16 %v353, %v351
        %v414 = vpack.c.b16 %v354, %v352
        %v415 = vpack.c.b16 %v357, %v355
        %v416 = vpack.c.b16 %v358, %v356
        %v417 = vpack.c.b16 %v361, %v359
        %v418 = vpack.c.b16 %v362, %v360
        %v419 = vpack.c.b16 %v365, %v363
        %v420 = vpack.c.b16 %v366, %v364
        %v421 = vpack.c.b16 %v369, %v367
        %v422 = vpack.c.b16 %v370, %v368
        %v423 = vpack.c.b16 %v373, %v371
        %v424 = vpack.c.b16 %v374, %v372
        %v425 = vpack.c.b16 %v377, %v375
        %v426 = vpack.c.b16 %v378, %v376
        %v427 = vpack.c.b16 %v381, %v379
        %v428 = vpack.c.b16 %v382, %v380
        %v429 = vpack.c.b16 %v385, %v383
        %v430 = vpack.c.b16 %v386, %v384
        %v431 = vpack.c.b16 %v389, %v387
        %v432 = vpack.c.b16 %v390, %v388
        %v433 = vpack.c.b16 %v393, %v391
        %v434 = vpack.c.b16 %v394, %v392
        %v435 = vpack.c.b16 %v397, %v395
        %v436 = vpack.c.b16 %v398, %v396
        %v437 = vpack.c.b16 %v401, %v399
        %v438 = vpack.c.b16 %v402, %v400
        %v439 = vpack.c.b16 %v405, %v403
        %v440 = vpack.c.b16 %v406, %v404
        %v441 = vpack.c.b16 %v409, %v407
        %v442 = vpack.c.b16 %v410, %v408
        %v507 = vunpack.c.l.b16 %v283
        %v508 = vunpack.c.l.b16 %v284
        %v509 = vunpack.c.l.b16 %v285
        %v510 = vunpack.c.l.b16 %v286
        %v511 = vunpack.c.l.b16 %v287
        %v512 = vunpack.c.l.b16 %v288
        %v513 = vunpack.c.l.b16 %v289
        %v514 = vunpack.c.l.b16 %v290
        %v515 = vunpack.c.l.b16 %v291
        %v516 = vunpack.c.l.b16 %v292
        %v517 = vunpack.c.l.b16 %v293
        %v518 = vunpack.c.l.b16 %v294
        %v519 = vunpack.c.l.b16 %v295
        %v520 = vunpack.c.l.b16 %v296
        %v521 = vunpack.c.l.b16 %v297
        %v522 = vunpack.c.l.b16 %v298
        %v523 = vunpack.c.l.b16 %v299
        %v524 = vunpack.c.l.b16 %v300
        %v525 = vunpack.c.l.b16 %v301
        %v526 = vunpack.c.l.b16 %v302
        %v527 = vunpack.c.l.b16 %v303
        %v528 = vunpack.c.l.b16 %v304
        %v529 = vunpack.c.l.b16 %v305
        %v530 = vunpack.c.l.b16 %v306
        %v531 = vunpack.c.l.b16 %v307
        %v532 = vunpack.c.l.b16 %v308
        %v533 = vunpack.c.l.b16 %v309
        %v534 = vunpack.c.l.b16 %v310
        %v535 = vunpack.c.l.b16 %v311
        %v536 = vunpack.c.l.b16 %v312
        %v537 = vunpack.c.l.b16 %v313
        %v538 = vunpack.c.l.b16 %v314
        %v539 = vpack.c.b16 %v508, %v507
        %v540 = vpack.c.b16 %v510, %v509
        %v541 = vpack.c.b16 %v512, %v511
        %v542 = vpack.c.b16 %v514, %v513
        %v543 = vpack.c.b16 %v516, %v515
        %v544 = vpack.c.b16 %v518, %v517
        %v545 = vpack.c.b16 %v520, %v519
        %v546 = vpack.c.b16 %v522, %v521
        %v547 = vpack.c.b16 %v524, %v523
        %v548 = vpack.c.b16 %v526, %v525
        %v549 = vpack.c.b16 %v528, %v527
        %v550 = vpack.c.b16 %v530, %v529
        %v551 = vpack.c.b16 %v532, %v531
        %v552 = vpack.c.b16 %v534, %v533
        %v553 = vpack.c.b16 %v536, %v535
        %v554 = vpack.c.b16 %v538, %v537
        %571 = vmatprep.subr.bf16.mxu0 0
        %572 = vmatpush1.bf16.msra.mxu0 %v546
        %573 = vmatprep.subr.bf16.mxu0 0
        %574 = vmatpush1.bf16.msra.mxu0 %v545
        %575 = vmatprep.subr.bf16.mxu0 0
        %576 = vmatpush1.bf16.msra.mxu0 %v544
        %577 = vmatprep.subr.bf16.mxu0 0
        %578 = vmatpush1.bf16.msra.mxu0 %v543
        %579 = vmatprep.subr.bf16.mxu0 0
        %580 = vmatpush1.bf16.msra.mxu0 %v542
        %581 = vmatprep.subr.bf16.mxu0 0
        %582 = vmatpush1.bf16.msra.mxu0 %v541
        %583 = vmatprep.subr.bf16.mxu0 0
        %584 = vmatpush1.bf16.msra.mxu0 %v540
        %585 = vmatprep.subr.bf16.mxu0 0
        %586 = vmatpush1.bf16.msra.mxu0 %v539
        %587 = vmatprep.subr.bf16.mxu0 0
        %588 = vmatpush2.bf16.msra.mxu0 %v554
        %589 = vmatprep.subr.bf16.mxu0 0
        %590 = vmatpush2.bf16.msra.mxu0 %v553
        %591 = vmatprep.subr.bf16.mxu0 0
        %592 = vmatpush2.bf16.msra.mxu0 %v552
        %593 = vmatprep.subr.bf16.mxu0 0
        %594 = vmatpush2.bf16.msra.mxu0 %v551
        %595 = vmatprep.subr.bf16.mxu0 0
        %596 = vmatpush2.bf16.msra.mxu0 %v550
        %597 = vmatprep.subr.bf16.mxu0 0
        %598 = vmatpush2.bf16.msra.mxu0 %v549
        %599 = vmatprep.subr.bf16.mxu0 0
        %600 = vmatpush2.bf16.msra.mxu0 %v548
        %601 = vmatprep.subr.bf16.mxu0 0
        %602 = vmatpush2.bf16.msra.mxu0 %v547
        %603 = vmatprep.mubr.bf16.mxu0 %v412
        %604 = vmatmul.mubr.bf16.gmra.mxu0 %v411
        %v605 = vpop.f32.mrf.mxu0
        %v606 = vadd.f32 0.0, %v605
        %v607 = vpop.f32.mrf.mxu0
        %v608 = vpop.f32.mrf.mxu0
        %v609 = vadd.f32 0.0, %v608
        %v610 = vpop.f32.mrf.mxu0
        %611 = vmatprep.mubr.bf16.mxu0 %v414
        %612 = vmatmul.mubr.bf16.gmra.mxu0 %v413
        %v613 = vpop.f32.mrf.mxu0
        %v614 = vadd.f32 0.0, %v613
        %v615 = vpop.f32.mrf.mxu0
        %v616 = vpop.f32.mrf.mxu0
        %v617 = vadd.f32 0.0, %v616
        %v618 = vpop.f32.mrf.mxu0
        %619 = vmatprep.mubr.bf16.mxu0 %v416
        %620 = vmatmul.mubr.bf16.gmra.mxu0 %v415
        %v621 = vpop.f32.mrf.mxu0
        %v622 = vadd.f32 0.0, %v621
        %v623 = vpop.f32.mrf.mxu0
        %v624 = vpop.f32.mrf.mxu0
        %v625 = vadd.f32 0.0, %v624
        %v626 = vpop.f32.mrf.mxu0
        %627 = vmatprep.mubr.bf16.mxu0 %v418
        %628 = vmatmul.mubr.bf16.gmra.mxu0 %v417
        %v629 = vpop.f32.mrf.mxu0
        %v630 = vadd.f32 0.0, %v629
        %v631 = vpop.f32.mrf.mxu0
        %v632 = vpop.f32.mrf.mxu0
        %v633 = vadd.f32 0.0, %v632
        %v634 = vpop.f32.mrf.mxu0
        %635 = vmatprep.mubr.bf16.mxu0 %v420
        %636 = vmatmul.mubr.bf16.gmra.mxu0 %v419
        %v637 = vpop.f32.mrf.mxu0
        %v638 = vadd.f32 0.0, %v637
        %v639 = vpop.f32.mrf.mxu0
        %v640 = vpop.f32.mrf.mxu0
        %v641 = vadd.f32 0.0, %v640
        %v642 = vpop.f32.mrf.mxu0
        %643 = vmatprep.mubr.bf16.mxu0 %v422
        %644 = vmatmul.mubr.bf16.gmra.mxu0 %v421
        %v645 = vpop.f32.mrf.mxu0
        %v646 = vadd.f32 0.0, %v645
        %v647 = vpop.f32.mrf.mxu0
        %v648 = vpop.f32.mrf.mxu0
        %v649 = vadd.f32 0.0, %v648
        %v650 = vpop.f32.mrf.mxu0
        %651 = vmatprep.mubr.bf16.mxu0 %v424
        %652 = vmatmul.mubr.bf16.gmra.mxu0 %v423
        %v653 = vpop.f32.mrf.mxu0
        %v654 = vadd.f32 0.0, %v653
        %v655 = vpop.f32.mrf.mxu0
        %v656 = vpop.f32.mrf.mxu0
        %v657 = vadd.f32 0.0, %v656
        %v658 = vpop.f32.mrf.mxu0
        %659 = vmatprep.mubr.bf16.mxu0 %v426
        %660 = vmatmul.mubr.bf16.gmra.mxu0 %v425
        %v661 = vpop.f32.mrf.mxu0
        %v662 = vadd.f32 0.0, %v661
        %v663 = vpop.f32.mrf.mxu0
        %v664 = vpop.f32.mrf.mxu0
        %v665 = vadd.f32 0.0, %v664
        %v666 = vpop.f32.mrf.mxu0
        %667 = vmatprep.mubr.bf16.mxu0 %v428
        %668 = vmatmul.mubr.bf16.gmra.mxu0 %v427
        %v669 = vpop.f32.mrf.mxu0
        %v670 = vadd.f32 0.0, %v669
        %v671 = vpop.f32.mrf.mxu0
        %v672 = vpop.f32.mrf.mxu0
        %v673 = vadd.f32 0.0, %v672
        %v674 = vpop.f32.mrf.mxu0
        %675 = vmatprep.mubr.bf16.mxu0 %v430
        %676 = vmatmul.mubr.bf16.gmra.mxu0 %v429
        %v677 = vpop.f32.mrf.mxu0
        %v678 = vadd.f32 0.0, %v677
        %v679 = vpop.f32.mrf.mxu0
        %v680 = vpop.f32.mrf.mxu0
        %v681 = vadd.f32 0.0, %v680
        %v682 = vpop.f32.mrf.mxu0
        %683 = vmatprep.mubr.bf16.mxu0 %v432
        %684 = vmatmul.mubr.bf16.gmra.mxu0 %v431
        %v685 = vpop.f32.mrf.mxu0
        %v686 = vadd.f32 0.0, %v685
        %v687 = vpop.f32.mrf.mxu0
        %v688 = vpop.f32.mrf.mxu0
        %v689 = vadd.f32 0.0, %v688
        %v690 = vpop.f32.mrf.mxu0
        %691 = vmatprep.mubr.bf16.mxu0 %v434
        %692 = vmatmul.mubr.bf16.gmra.mxu0 %v433
        %v693 = vpop.f32.mrf.mxu0
        %v694 = vadd.f32 0.0, %v693
        %v695 = vpop.f32.mrf.mxu0
        %v696 = vpop.f32.mrf.mxu0
        %v697 = vadd.f32 0.0, %v696
        %v698 = vpop.f32.mrf.mxu0
        %699 = vmatprep.mubr.bf16.mxu0 %v436
        %700 = vmatmul.mubr.bf16.gmra.mxu0 %v435
        %v701 = vpop.f32.mrf.mxu0
        %v702 = vadd.f32 0.0, %v701
        %v703 = vpop.f32.mrf.mxu0
        %v704 = vpop.f32.mrf.mxu0
        %v705 = vadd.f32 0.0, %v704
        %v706 = vpop.f32.mrf.mxu0
        %707 = vmatprep.mubr.bf16.mxu0 %v438
        %708 = vmatmul.mubr.bf16.gmra.mxu0 %v437
        %v709 = vpop.f32.mrf.mxu0
        %v710 = vadd.f32 0.0, %v709
        %v711 = vpop.f32.mrf.mxu0
        %v712 = vpop.f32.mrf.mxu0
        %v713 = vadd.f32 0.0, %v712
        %v714 = vpop.f32.mrf.mxu0
        %715 = vmatprep.mubr.bf16.mxu0 %v440
        %716 = vmatmul.mubr.bf16.gmra.mxu0 %v439
        %v717 = vpop.f32.mrf.mxu0
        %v718 = vadd.f32 0.0, %v717
        %v719 = vpop.f32.mrf.mxu0
        %v720 = vpop.f32.mrf.mxu0
        %v721 = vadd.f32 0.0, %v720
        %v722 = vpop.f32.mrf.mxu0
        %723 = vmatprep.mubr.bf16.mxu0 %v442
        %724 = vmatmul.mubr.bf16.gmra.mxu0 %v441
        %v725 = vpop.f32.mrf.mxu0
        %v726 = vadd.f32 0.0, %v725
        %v727 = vpop.f32.mrf.mxu0
        %v728 = vpop.f32.mrf.mxu0
        %v729 = vadd.f32 0.0, %v728
        %v730 = vpop.f32.mrf.mxu0
        %731 = vdwg.mxu0
        %v732 = vmax.f32 %v606, 0.0
        %v733 = vmax.f32 %v609, 0.0
        %v734 = vmax.f32 %v614, 0.0
        %v735 = vmax.f32 %v617, 0.0
        %v736 = vmax.f32 %v622, 0.0
        %v737 = vmax.f32 %v625, 0.0
        %v738 = vmax.f32 %v630, 0.0
        %v739 = vmax.f32 %v633, 0.0
        %v740 = vmax.f32 %v638, 0.0
        %v741 = vmax.f32 %v641, 0.0
        %v742 = vmax.f32 %v646, 0.0
        %v743 = vmax.f32 %v649, 0.0
        %v744 = vmax.f32 %v654, 0.0
        %v745 = vmax.f32 %v657, 0.0
        %v746 = vmax.f32 %v662, 0.0
        %v747 = vmax.f32 %v665, 0.0
        %v748 = vmax.f32 %v670, 0.0
        %v749 = vmax.f32 %v673, 0.0
        %v750 = vmax.f32 %v678, 0.0
        %v751 = vmax.f32 %v681, 0.0
        %v752 = vmax.f32 %v686, 0.0
        %v753 = vmax.f32 %v689, 0.0
        %v754 = vmax.f32 %v694, 0.0
        %v755 = vmax.f32 %v697, 0.0
        %v756 = vmax.f32 %v702, 0.0
        %v757 = vmax.f32 %v705, 0.0
        %v758 = vmax.f32 %v710, 0.0
        %v759 = vmax.f32 %v713, 0.0
        %v760 = vmax.f32 %v718, 0.0
        %v761 = vmax.f32 %v721, 0.0
        %v762 = vmax.f32 %v726, 0.0
        %v763 = vmax.f32 %v729, 0.0
        %v764 = vpack.c.bf16 %v733, %v732
        %v765 = vpack.c.bf16 %v735, %v734
        %v766 = vpack.c.bf16 %v737, %v736
        %v767 = vpack.c.bf16 %v739, %v738
        %v768 = vpack.c.bf16 %v741, %v740
        %v769 = vpack.c.bf16 %v743, %v742
        %v770 = vpack.c.bf16 %v745, %v744
        %v771 = vpack.c.bf16 %v747, %v746
        %v772 = vpack.c.bf16 %v749, %v748
        %v773 = vpack.c.bf16 %v751, %v750
        %v774 = vpack.c.bf16 %v753, %v752
        %v775 = vpack.c.bf16 %v755, %v754
        %v776 = vpack.c.bf16 %v757, %v756
        %v777 = vpack.c.bf16 %v759, %v758
        %v778 = vpack.c.bf16 %v761, %v760
        %v779 = vpack.c.bf16 %v763, %v762
        %v796 = vunpack.c.l.b16 %v764
        %v797 = vunpack.c.h.b16 %v764
        %v798 = vunpack.c.l.b16 %v765
        %v799 = vunpack.c.h.b16 %v765
        %v800 = vunpack.c.l.b16 %v766
        %v801 = vunpack.c.h.b16 %v766
        %v802 = vunpack.c.l.b16 %v767
        %v803 = vunpack.c.h.b16 %v767
        %v804 = vunpack.c.l.b16 %v768
        %v805 = vunpack.c.h.b16 %v768
        %v806 = vunpack.c.l.b16 %v769
        %v807 = vunpack.c.h.b16 %v769
        %v808 = vunpack.c.l.b16 %v770
        %v809 = vunpack.c.h.b16 %v770
        %v810 = vunpack.c.l.b16 %v771
        %v811 = vunpack.c.h.b16 %v771
        %v812 = vunpack.c.l.b16 %v772
        %v813 = vunpack.c.h.b16 %v772
        %v814 = vunpack.c.l.b16 %v773
        %v815 = vunpack.c.h.b16 %v773
        %v816 = vunpack.c.l.b16 %v774
        %v817 = vunpack.c.h.b16 %v774
        %v818 = vunpack.c.l.b16 %v775
        %v819 = vunpack.c.h.b16 %v775
        %v820 = vunpack.c.l.b16 %v776
        %v821 = vunpack.c.h.b16 %v776
        %v822 = vunpack.c.l.b16 %v777
        %v823 = vunpack.c.h.b16 %v777
        %v824 = vunpack.c.l.b16 %v778
        %v825 = vunpack.c.h.b16 %v778
        %v826 = vunpack.c.l.b16 %v779
        %v827 = vunpack.c.h.b16 %v779
        %v828 = vpack.c.b16 %v796, %v796
        %v829 = vpack.c.b16 %v797, %v797
        %v830 = vpack.c.b16 %v798, %v798
        %v831 = vpack.c.b16 %v799, %v799
        %v832 = vpack.c.b16 %v800, %v800
        %v833 = vpack.c.b16 %v801, %v801
        %v834 = vpack.c.b16 %v802, %v802
        %v835 = vpack.c.b16 %v803, %v803
        %v836 = vpack.c.b16 %v804, %v804
        %v837 = vpack.c.b16 %v805, %v805
        %v838 = vpack.c.b16 %v806, %v806
        %v839 = vpack.c.b16 %v807, %v807
        %v840 = vpack.c.b16 %v808, %v808
        %v841 = vpack.c.b16 %v809, %v809
        %v842 = vpack.c.b16 %v810, %v810
        %v843 = vpack.c.b16 %v811, %v811
        %v844 = vpack.c.b16 %v812, %v812
        %v845 = vpack.c.b16 %v813, %v813
        %v846 = vpack.c.b16 %v814, %v814
        %v847 = vpack.c.b16 %v815, %v815
        %v848 = vpack.c.b16 %v816, %v816
        %v849 = vpack.c.b16 %v817, %v817
        %v850 = vpack.c.b16 %v818, %v818
        %v851 = vpack.c.b16 %v819, %v819
        %v852 = vpack.c.b16 %v820, %v820
        %v853 = vpack.c.b16 %v821, %v821
        %v854 = vpack.c.b16 %v822, %v822
        %v855 = vpack.c.b16 %v823, %v823
        %v856 = vpack.c.b16 %v824, %v824
        %v857 = vpack.c.b16 %v825, %v825
        %v858 = vpack.c.b16 %v826, %v826
        %v859 = vpack.c.b16 %v827, %v827
        %s892 = smul.u32 %s241, 32
        %s893 = sadd.s32 %s243, %s892
        %s894 = smul.addr %s893, 4
        %s895 = scalar_lea.vmem [#allocation2], %s894
        %896 = vst [vmem:[%s895] sm:$0xf] %v828
        %897 = vst [vmem:[%s895 + $0x4] sm:$0xf] %v829
        %898 = vst [vmem:[%s895 + $0x8] sm:$0xf] %v830
        %899 = vst [vmem:[%s895 + $0xc] sm:$0xf] %v831
        %900 = vst [vmem:[%s895 + $0x10] sm:$0xf] %v832
        %901 = vst [vmem:[%s895 + $0x14] sm:$0xf] %v833
        %902 = vst [vmem:[%s895 + $0x18] sm:$0xf] %v834
        %903 = vst [vmem:[%s895 + $0x1c] sm:$0xf] %v835
        %904 = vst [vmem:[%s895 + $0x20] sm:$0xf] %v836
        %905 = vst [vmem:[%s895 + $0x24] sm:$0xf] %v837
        %906 = vst [vmem:[%s895 + $0x28] sm:$0xf] %v838
        %907 = vst [vmem:[%s895 + $0x2c] sm:$0xf] %v839
        %908 = vst [vmem:[%s895 + $0x30] sm:$0xf] %v840
        %909 = vst [vmem:[%s895 + $0x34] sm:$0xf] %v841
        %910 = vst [vmem:[%s895 + $0x38] sm:$0xf] %v842
        %911 = vst [vmem:[%s895 + $0x3c] sm:$0xf] %v843
        %912 = vst [vmem:[%s895 + $0x40] sm:$0xf] %v844
        %913 = vst [vmem:[%s895 + $0x44] sm:$0xf] %v845
        %914 = vst [vmem:[%s895 + $0x48] sm:$0xf] %v846
        %915 = vst [vmem:[%s895 + $0x4c] sm:$0xf] %v847
        %916 = vst [vmem:[%s895 + $0x50] sm:$0xf] %v848
        %917 = vst [vmem:[%s895 + $0x54] sm:$0xf] %v849
        %918 = vst [vmem:[%s895 + $0x58] sm:$0xf] %v850
        %919 = vst [vmem:[%s895 + $0x5c] sm:$0xf] %v851
        %920 = vst [vmem:[%s895 + $0x60] sm:$0xf] %v852
        %921 = vst [vmem:[%s895 + $0x64] sm:$0xf] %v853
        %922 = vst [vmem:[%s895 + $0x68] sm:$0xf] %v854
        %923 = vst [vmem:[%s895 + $0x6c] sm:$0xf] %v855
        %924 = vst [vmem:[%s895 + $0x70] sm:$0xf] %v856
        %925 = vst [vmem:[%s895 + $0x74] sm:$0xf] %v857
        %926 = vst [vmem:[%s895 + $0x78] sm:$0xf] %v858
        %927 = vst [vmem:[%s895 + $0x7c] sm:$0xf] %v859
        %928 = vst [vmem:[#allocation8] sm:$0xff] %v732
        %929 = vst [vmem:[#allocation8 + $0x8] sm:$0xff] %v733
        %930 = vst [vmem:[#allocation8 + $0x10] sm:$0xff] %v734
        %931 = vst [vmem:[#allocation8 + $0x18] sm:$0xff] %v735
        %932 = vst [vmem:[#allocation8 + $0x20] sm:$0xff] %v736
        %933 = vst [vmem:[#allocation8 + $0x28] sm:$0xff] %v737
        %934 = vst [vmem:[#allocation8 + $0x30] sm:$0xff] %v738
        %935 = vst [vmem:[#allocation8 + $0x38] sm:$0xff] %v739
        %936 = vst [vmem:[#allocation8 + $0x40] sm:$0xff] %v740
        %937 = vst [vmem:[#allocation8 + $0x48] sm:$0xff] %v741
        %938 = vst [vmem:[#allocation8 + $0x50] sm:$0xff] %v742
        %939 = vst [vmem:[#allocation8 + $0x58] sm:$0xff] %v743
        %940 = vst [vmem:[#allocation8 + $0x60] sm:$0xff] %v744
        %941 = vst [vmem:[#allocation8 + $0x68] sm:$0xff] %v745
        %942 = vst [vmem:[#allocation8 + $0x70] sm:$0xff] %v746
        %943 = vst [vmem:[#allocation8 + $0x78] sm:$0xff] %v747
        %944 = vst [vmem:[#allocation8 + $0x80] sm:$0xff] %v748
        %945 = vst [vmem:[#allocation8 + $0x88] sm:$0xff] %v749
        %946 = vst [vmem:[#allocation8 + $0x90] sm:$0xff] %v750
        %947 = vst [vmem:[#allocation8 + $0x98] sm:$0xff] %v751
        %948 = vst [vmem:[#allocation8 + $0xa0] sm:$0xff] %v752
        %949 = vst [vmem:[#allocation8 + $0xa8] sm:$0xff] %v753
        %950 = vst [vmem:[#allocation8 + $0xb0] sm:$0xff] %v754
        %951 = vst [vmem:[#allocation8 + $0xb8] sm:$0xff] %v755
        %952 = vst [vmem:[#allocation8 + $0xc0] sm:$0xff] %v756
        %953 = vst [vmem:[#allocation8 + $0xc8] sm:$0xff] %v757
        %954 = vst [vmem:[#allocation8 + $0xd0] sm:$0xff] %v758
        %955 = vst [vmem:[#allocation8 + $0xd8] sm:$0xff] %v759
        %956 = vst [vmem:[#allocation8 + $0xe0] sm:$0xff] %v760
        %957 = vst [vmem:[#allocation8 + $0xe8] sm:$0xff] %v761
        %958 = vst [vmem:[#allocation8 + $0xf0] sm:$0xff] %v762
        %959 = vst [vmem:[#allocation8 + $0xf8] sm:$0xff] %v763
        // Predicated region
        $region41: #{tpu_custom_call.1} parent=27 // pred_check
          %p960 = pneg %p88
        $region42: #{tpu_custom_call.1} parent=27 // pred_check_branch
          %962 = sbr.rel (%p960) target = $region44
        $region43: #{tpu_custom_call.1} parent=27 // pred_region
          %s963 = smul.u32 32, %s21
          %s965 = ssub.s32 4096, 4096
          %966 = vsyncadd [#allocation5], %s965
          %s967 = smul.addr %s963, 128
          %s968 = scalar_lea.hbm %s2, %s967
          %s969 = sshll.u32 [#allocation8], 4
          %s970 = int_to_ptr.vmem [resolvable:$true] %s969
          %975 = dma.vmem_to_hbm [thread:$0]  %s970, 4096, %s968, [#allocation5], 128, 128, 8
        $region44: #{tpu_custom_call.1} parent=27 // pred_fallthru
          _
        // Predicated region
        $region45: #{tpu_custom_call.1} parent=27 // pred_check
          %p976 = pneg %p88
        $region46: #{tpu_custom_call.1} parent=27 // pred_check_branch
          %978 = sbr.rel (%p976) target = $region48
        $region47: #{tpu_custom_call.1} parent=27 // pred_region
          %979 = dma.done [#allocation5], 4096
        $region48: #{tpu_custom_call.1} parent=27 // pred_fallthru
          _
      $region28: #{tpu_custom_call.1} parent=5 // pred_fallthru
        _
      %p980 = scmp.le.s32.totalorder 2, %s11
      // Predicated region
      $region49: #{tpu_custom_call.1} parent=5 // pred_check
        %p981 = pneg %p980
      $region50: #{tpu_custom_call.1} parent=5 // pred_check_branch
        %983 = sbr.rel (%p981) target = $region52
      $region51: #{tpu_custom_call.1} parent=5 // pred_region
        %s984 = ssub.s32 %s11, 2
      $region52: #{tpu_custom_call.1} parent=5 // pred_fallthru
        _
    $region6: #{tpu_custom_call.1} parent=1 // loop_footer
      %s15 = sadd.s32 1, %s11
    $region7: #{tpu_custom_call.1} parent=1 // loop_footer_branch
      %10 = sbr.rel target = $region3
    $region8: #{tpu_custom_call.1} parent=1 // loop_exit
      _
    %985 = vsyncpa [#allocation4], 1
    %s986 = scalar_lea.sflag [#allocation4], 1
    %987 = vsyncpa %s986, 1
    %988 = vsyncpa [#allocation7], 1
    %989 = vsyncpa [#allocation5], 1
    %s990 = scalar_lea.sflag [#allocation5], 1
    %991 = vsyncpa %s990, 1

</llo_original>
